<compile_context>
chip_gen: v7x
topology: tpu7x:2x2x1
jax: 0.10.0
libtpu: 0.0.40
codegen_flags: <defaults>
</compile_context>

<pallas_src>
import jax
import jax.numpy as jnp
from jax import lax
from jax.experimental import pallas as pl
from jax.experimental.pallas import tpu as pltpu

_EPS = 1e-8  # torch.nn.CosineSimilarity default eps


def _scan_kernel(img_ref, cap_ref, out_ref):
    img = img_ref[...]                        # (Bblk, R, D)
    cap = cap_ref[...]                        # (Bblk, T, D)

    img_f = img.astype(jnp.float32)
    cap_f = cap.astype(jnp.float32)

    # Row norms in f32. cap norms stay sublane-shaped (T, 1); img norms are
    # reshaped lane-major (1, R) so both broadcast cheaply onto the score tile.
    img_norm = jnp.sqrt(jnp.sum(img_f * img_f, axis=-1))                 # (Bblk, R)
    cap_norm = jnp.sqrt(jnp.sum(cap_f * cap_f, axis=-1, keepdims=True))  # (Bblk, T, 1)

    # Raw dots on the MXU, f32 accumulation: s[b,t,r] = <cap[b,t,:], img[b,r,:]>
    dots = lax.dot_general(
        cap, img,
        dimension_numbers=(((2,), (2,)), ((0,), (0,))),
        preferred_element_type=jnp.float32,
    )                                         # (Bblk, T, R)

    # Cosine similarity with PyTorch's eps semantics (clamp the product of norms),
    # applied to the tiny (T, R) tile instead of pre-normalizing the big operands.
    denom = jnp.maximum(cap_norm * img_norm[:, None, :], _EPS)           # (Bblk, T, R)
    s = dots / denom

    # Softmax over regions (last axis -> pure lane reduction, no relayout).
    m = jnp.max(s, axis=-1, keepdims=True)
    e = jnp.exp(s - m)
    a = e / jnp.sum(e, axis=-1, keepdims=True)                           # (Bblk, T, R)

    # out[b,t,d] = sum_r a[b,t,r] * img[b,r,d]   ((T,R)x(R,D) -> MXU, no transpose)
    out = lax.dot_general(
        a.astype(img.dtype), img,
        dimension_numbers=(((2,), (1,)), ((0,), (0,))),
        preferred_element_type=jnp.float32,
    )                                         # (Bblk, T, D)
    out_ref[...] = out.astype(out_ref.dtype)


def _round_up(n, m):
    return n + (-n) % m


def _largest_divisor_leq(n, cap):
    cap = max(1, min(n, cap))
    for d in range(cap, 0, -1):
        if n % d == 0:
            return d
    return 1


def scan_forward(img_feats, cap_feats, cap_mask=None):
    """Pallas implementation of SCAN.forward. cap_mask is unused (matches torch)."""
    del cap_mask  # the PyTorch forward also ignores it

    R, D = img_feats.shape[-2], img_feats.shape[-1]
    img_feats = img_feats.reshape(-1, R, D)   # torch.reshape(img, (-1, R, D))
    B, T, Dc = cap_feats.shape
    assert Dc == D and img_feats.shape[0] == B

    out_dtype = img_feats.dtype
    in_b = jnp.dtype(img_feats.dtype).itemsize
    out_b = jnp.dtype(out_dtype).itemsize

    # VMEM budget: query the chip (64 MiB/TC on v7x, 128 MiB on v5e/v6e).
    try:
        vmem_cap = int(pltpu.get_tpu_info().vmem_capacity_bytes)
    except Exception:  # no hw info available -> conservative (v7x) assumption
        vmem_cap = 64 * 1024 * 1024
    vmem_limit = min((vmem_cap * 3) // 4, 96 * 1024 * 1024)

    # Per-batch-element VMEM footprint: double-buffered IO blocks + f32 temporaries.
    per_b = 2 * (R * D + T * D) * in_b              # img/cap blocks (double buffered)
    per_b += 2 * T * D * out_b                      # out block (double buffered)
    per_b += (R * D + T * D) * 4                    # f32 casts used for the norms
    per_b += 4 * (3 * T * R + T * D + R + 2 * T)    # scores/exp/attn, f32 out, norms

    budget = (vmem_limit * 17) // 20                # target ~85% of requested limit
    bblk_max = int(max(1, min(B, budget // max(per_b, 1))))

    # Prefer a block size that divides B (no batch padding, no output slice);
    # fall back to padding only if the best divisor wastes >half of the budget.
    bblk = _largest_divisor_leq(B, bblk_max)
    if 2 * bblk <= bblk_max:
        bblk = bblk_max
    Bp = _round_up(B, bblk)

    img_p, cap_p = img_feats, cap_feats
    if Bp != B:
        img_p = jnp.pad(img_feats, ((0, Bp - B), (0, 0), (0, 0)))
        cap_p = jnp.pad(cap_feats, ((0, Bp - B), (0, 0), (0, 0)))

    out = pl.pallas_call(
        _scan_kernel,
        out_shape=jax.ShapeDtypeStruct((Bp, T, D), out_dtype),
        grid_spec=pltpu.PrefetchScalarGridSpec(
            num_scalar_prefetch=0,
            grid=(Bp // bblk,),
            in_specs=[
                pl.BlockSpec((bblk, R, D), lambda b: (b, 0, 0)),
                pl.BlockSpec((bblk, T, D), lambda b: (b, 0, 0)),
            ],
            out_specs=pl.BlockSpec((bblk, T, D), lambda b: (b, 0, 0)),
        ),
        compiler_params=pltpu.CompilerParams(
            dimension_semantics=("parallel",),
            vmem_limit_bytes=vmem_limit,
        ),
    )(img_p, cap_p)

    return out[:B] if Bp != B else out


def _reference(img_feats, cap_feats):
    """Pure-JAX reference (exact PyTorch semantics: eps clamps the product)."""
    R, D = img_feats.shape[-2], img_feats.shape[-1]
    img = img_feats.reshape(-1, R, D).astype(jnp.float32)
    cap = cap_feats.astype(jnp.float32)
    img_n = jnp.linalg.norm(img, axis=-1)                 # (B, R)
    cap_n = jnp.linalg.norm(cap, axis=-1)                 # (B, T)
    dots = jnp.einsum("brd,btd->brt", img, cap)
    s = dots / jnp.maximum(img_n[:, :, None] * cap_n[:, None, :], _EPS)
    a = jax.nn.softmax(s, axis=1)                         # softmax over regions
    return jnp.einsum("brt,brd->btd", a, img)


if __name__ == "__main__":
    key = jax.random.PRNGKey(0)
    k1, k2 = jax.random.split(key)

    B, R, T, D = 2, 16, 8, 32
    img_feats = jax.random.normal(k1, (B, R, D), dtype=jnp.float32)
    cap_feats = jax.random.normal(k2, (B, T, D), dtype=jnp.float32)
    cap_mask = jnp.ones((B, T), dtype=jnp.float32)  # unused, signature parity

    out = scan_forward(img_feats, cap_feats, cap_mask)
    out = jax.block_until_ready(out)

    ref = _reference(img_feats, cap_feats)
    assert out.shape == (B, T, D), out.shape
    assert jnp.allclose(out, ref, atol=2e-3, rtol=2e-3), (
        float(jnp.max(jnp.abs(out - ref)))
    )
    print("KERNEL_OK")
</pallas_src>

<mosaic_0001>
module attributes {stable_mosaic.version = 11 : i64} {
  func.func @_scan_kernel(%arg0: i32, %arg1: memref<2x16x32xf32, #tpu.memory_space<vmem>>, %arg2: memref<2x8x32xf32, #tpu.memory_space<vmem>>, %arg3: memref<2x8x32xf32, #tpu.memory_space<vmem>>) attributes {dimension_semantics = [#tpu.dimension_semantics<parallel>], iteration_bounds = array<i64: 1>, scalar_prefetch = 0 : i64, scratch_operands = 0 : i64, tpu.core_type = #tpu.core_type<tc>, window_params = [{transform_indices = @transform_0, window_bounds = array<i64: 2, 16, 32>}, {transform_indices = @transform_1, window_bounds = array<i64: 2, 8, 32>}, {transform_indices = @transform_2, window_bounds = array<i64: 2, 8, 32>}]} {
    %c0 = arith.constant 0 : index
    %c0_0 = arith.constant 0 : index
    %c0_1 = arith.constant 0 : index
    %0 = vector.load %arg1[%c0, %c0_0, %c0_1] : memref<2x16x32xf32, #tpu.memory_space<vmem>>, vector<2x16x32xf32>
    %c0_2 = arith.constant 0 : index
    %c0_3 = arith.constant 0 : index
    %c0_4 = arith.constant 0 : index
    %1 = vector.load %arg2[%c0_2, %c0_3, %c0_4] : memref<2x8x32xf32, #tpu.memory_space<vmem>>, vector<2x8x32xf32>
    %2 = arith.mulf %0, %0 : vector<2x16x32xf32>
    %cst = arith.constant dense<0.000000e+00> : vector<2x16xf32>
    %3 = vector.multi_reduction <add>, %2, %cst [2] : vector<2x16x32xf32> to vector<2x16xf32>
    %4 = math.sqrt %3 : vector<2x16xf32>
    %5 = arith.mulf %1, %1 : vector<2x8x32xf32>
    %cst_5 = arith.constant dense<0.000000e+00> : vector<2x8xf32>
    %6 = vector.multi_reduction <add>, %5, %cst_5 [2] : vector<2x8x32xf32> to vector<2x8xf32>
    %7 = vector.shape_cast %6 : vector<2x8xf32> to vector<2x8x1xf32>
    %8 = math.sqrt %7 : vector<2x8x1xf32>
    %cst_6 = arith.constant dense<0.000000e+00> : vector<2x8x16xf32>
    %9 = tpu.matmul %1, %0, %cst_6 {dimension_numbers = #tpu.dot_dimension_numbers<[2], [2], [1], [1], [0, 0, 0, 1, 1, 1], [0], [0]>} : vector<2x8x32xf32>, vector<2x16x32xf32>, vector<2x8x16xf32> -> vector<2x8x16xf32>
    %10 = vector.shape_cast %4 : vector<2x16xf32> to vector<2x1x16xf32>
    %11 = vector.broadcast %8 : vector<2x8x1xf32> to vector<2x8x16xf32>
    %12 = vector.broadcast %10 : vector<2x1x16xf32> to vector<2x8x16xf32>
    %13 = arith.mulf %11, %12 : vector<2x8x16xf32>
    %cst_7 = arith.constant 9.99999993E-9 : f32
    %14 = vector.broadcast %cst_7 : f32 to vector<2x8x16xf32>
    %15 = arith.maximumf %13, %14 : vector<2x8x16xf32>
    %16 = arith.divf %9, %15 : vector<2x8x16xf32>
    %cst_8 = arith.constant dense<0xFF800000> : vector<2x8xf32>
    %17 = vector.multi_reduction <maximumf>, %16, %cst_8 [2] : vector<2x8x16xf32> to vector<2x8xf32>
    %18 = vector.shape_cast %17 : vector<2x8xf32> to vector<2x8x1xf32>
    %19 = vector.broadcast %18 : vector<2x8x1xf32> to vector<2x8x16xf32>
    %20 = arith.subf %16, %19 : vector<2x8x16xf32>
    %21 = math.exp %20 : vector<2x8x16xf32>
    %cst_9 = arith.constant dense<0.000000e+00> : vector<2x8xf32>
    %22 = vector.multi_reduction <add>, %21, %cst_9 [2] : vector<2x8x16xf32> to vector<2x8xf32>
    %23 = vector.shape_cast %22 : vector<2x8xf32> to vector<2x8x1xf32>
    %24 = vector.broadcast %23 : vector<2x8x1xf32> to vector<2x8x16xf32>
    %25 = arith.divf %21, %24 : vector<2x8x16xf32>
    %cst_10 = arith.constant dense<0.000000e+00> : vector<2x8x32xf32>
    %26 = tpu.matmul %25, %0, %cst_10 {dimension_numbers = #tpu.dot_dimension_numbers<[2], [1], [1], [2], [0, 0, 0, 1, 1, 2], [0], [0]>} : vector<2x8x16xf32>, vector<2x16x32xf32>, vector<2x8x32xf32> -> vector<2x8x32xf32>
    %c0_11 = arith.constant 0 : index
    %c0_12 = arith.constant 0 : index
    %c0_13 = arith.constant 0 : index
    %27 = vector.load %arg3[%c0_11, %c0_12, %c0_13] : memref<2x8x32xf32, #tpu.memory_space<vmem>>, vector<2x8x32xf32>
    tpu.vector_store %arg3[%c0_11, %c0_12, %c0_13], %26 {strides = array<i32>} : memref<2x8x32xf32, #tpu.memory_space<vmem>>, vector<2x8x32xf32>,
    return
  }
  func.func @transform_0(%arg0: i32) -> (i32, i32, i32) {
    %c0_i32 = arith.constant 0 : i32
    %c0_i32_0 = arith.constant 0 : i32
    %c0_i32_1 = arith.constant 0 : i32
    return %arg0, %c0_i32, %c0_i32_0 : i32, i32, i32
  }
  func.func @transform_1(%arg0: i32) -> (i32, i32, i32) {
    %c0_i32 = arith.constant 0 : i32
    %c0_i32_0 = arith.constant 0 : i32
    %c0_i32_1 = arith.constant 0 : i32
    return %arg0, %c0_i32, %c0_i32_0 : i32, i32, i32
  }
  func.func @transform_2(%arg0: i32) -> (i32, i32, i32) {
    %c0_i32 = arith.constant 0 : i32
    %c0_i32_0 = arith.constant 0 : i32
    %c0_i32_1 = arith.constant 0 : i32
    return %arg0, %c0_i32, %c0_i32_0 : i32, i32, i32
  }
}

</mosaic_0001>

<llo_original>
// kernel: tpu_custom_call.1
$region0: #{tpu_custom_call.1}
  #allocation0 [shape = 'u32[]', space=smem, size = 0x4, offset = 0x4, fixed_abs, tag = 'smem constant byte address 0x4 - core index']
  #allocation1 [shape = 'u32[144,128]{1,0:T(1,128)}', space=vmem, size = 0x12000, scoped, tag = 'internal scratch']
  %s0 = inlined_call_operand.hbm [shape: f32[2,16,32], index: 0, kind: input, shape index: {}]
  %s1 = inlined_call_operand.hbm [shape: f32[2,8,32], index: 1, kind: input, shape index: {}]
  %s2 = inlined_call_operand.hbm [shape: f32[2,8,32], index: 2, kind: output, shape index: {}]
  %s3 = sld [smem:[#allocation0]]
  $region26: #{tpu_custom_call.1} parent=0
    _
  %s5 = ssub.s32 1, %s3
  %s6 = scalar_select 0, %s5, %s3
  $region1: #{tpu_custom_call.1} parent=0
    #allocation2 [shape = 'u8[16384]{0}', space=vmem, size = 0x4000, scoped, tag = 'input window, operand 0, single buffered']
    #allocation3 [shape = 's32[1]{0}', space=sflag, size = 0x4, scoped, tag = 'scoped memory for tpu_custom_call.1']
    #allocation4 [shape = 's32[1]{0}', space=sflag, size = 0x4, scoped, tag = 'scoped memory for tpu_custom_call.1']
    #allocation5 [shape = 'u8[8192]{0}', space=vmem, size = 0x2000, scoped, tag = 'input window, operand 1, single buffered']
    #allocation6 [shape = 's32[1]{0}', space=sflag, size = 0x4, scoped, tag = 'scoped memory for tpu_custom_call.1']
    #allocation7 [shape = 'u8[8192]{0}', space=vmem, size = 0x2000, scoped, tag = 'output window, operand 0, single buffered']
    %7 = vsyncpa [#allocation3], 0
    %8 = vsyncpa [#allocation6], 0
    %9 = vsyncpa [#allocation4], 0
    // Predicated region
    $region2: #{tpu_custom_call.1} parent=1 // pred_check
      _
    $region3: #{tpu_custom_call.1} parent=1 // pred_check_branch
      %11 = sbr.rel (0) target = $region5
    $region4: #{tpu_custom_call.1} parent=1 // pred_region
      %s13 = ssub.s32 512, 512
      %14 = vsyncadd [#allocation3], %s13
      %s15 = sshll.u32 [#allocation2], 4
      %s16 = int_to_ptr.vmem [resolvable:$true] %s15
      %21 = dma.hbm_to_vmem [thread:$0]  %s0, 512, %s16, [#allocation3], 128, 128, 8
    $region5: #{tpu_custom_call.1} parent=1 // pred_fallthru
      _
    // Predicated region
    $region6: #{tpu_custom_call.1} parent=1 // pred_check
      _
    $region7: #{tpu_custom_call.1} parent=1 // pred_check_branch
      %23 = sbr.rel (0) target = $region9
    $region8: #{tpu_custom_call.1} parent=1 // pred_region
      %s25 = ssub.s32 256, 256
      %26 = vsyncadd [#allocation6], %s25
      %s27 = sshll.u32 [#allocation5], 4
      %s28 = int_to_ptr.vmem [resolvable:$true] %s27
      %33 = dma.hbm_to_vmem [thread:$0]  %s1, 256, %s28, [#allocation6], 128, 128, 8
    $region9: #{tpu_custom_call.1} parent=1 // pred_fallthru
      _
    // Predicated region
    $region10: #{tpu_custom_call.1} parent=1 // pred_check
      _
    $region11: #{tpu_custom_call.1} parent=1 // pred_check_branch
      %35 = sbr.rel (0) target = $region13
    $region12: #{tpu_custom_call.1} parent=1 // pred_region
      %36 = dma.done [#allocation3], 512
    $region13: #{tpu_custom_call.1} parent=1 // pred_fallthru
      _
    // Predicated region
    $region14: #{tpu_custom_call.1} parent=1 // pred_check
      _
    $region15: #{tpu_custom_call.1} parent=1 // pred_check_branch
      %38 = sbr.rel (0) target = $region17
    $region16: #{tpu_custom_call.1} parent=1 // pred_region
      %39 = dma.done [#allocation6], 256
    $region17: #{tpu_custom_call.1} parent=1 // pred_fallthru
      _
    %v40 = vld [vmem:[#allocation2] sm:$0xff]
    %v41 = vld [vmem:[#allocation2 + $0x8] sm:$0xff]
    %v42 = vld [vmem:[#allocation2 + $0x10] sm:$0xff]
    %v43 = vld [vmem:[#allocation2 + $0x18] sm:$0xff]
    %v44 = vld [vmem:[#allocation5] sm:$0xff]
    %v45 = vld [vmem:[#allocation5 + $0x8] sm:$0xff]
    %v46 = vmul.f32 %v40, %v40
    %v47 = vmul.f32 %v41, %v41
    %v48 = vmul.f32 %v42, %v42
    %v49 = vmul.f32 %v43, %v43
    %vm50 = vcmask 261120
    %v51 = vsel %vm50, %v46, 0.0
    %52 = vadd.xlane.f32.xlu0 %v51
    %v53 = vpop.xlane.xlu0 %52
    %v54 = vsel %vm50, %v47, 0.0
    %55 = vadd.xlane.f32.xlu0 %v54
    %v56 = vpop.xlane.xlu0 %55
    %v57 = vsel %vm50, %v48, 0.0
    %58 = vadd.xlane.f32.xlu0 %v57
    %v59 = vpop.xlane.xlu0 %58
    %v60 = vsel %vm50, %v49, 0.0
    %61 = vadd.xlane.f32.xlu0 %v60
    %v62 = vpop.xlane.xlu0 %61
    %v63 = vrsqrt.pop %v53
    %v64 = vmul.f32 %v53, %v63
    %vm65 = vcmp.eq.f32.partialorder %v53, inf
    %v66 = vsel %vm65, %v53, %v64
    %vm67 = vcmp.eq.f32.partialorder %v53, 0.0
    %v68 = vand.u32 %v53, 2147483648
    %v69 = vsel %vm67, %v68, %v66
    %v70 = vrsqrt.pop %v56
    %v71 = vmul.f32 %v56, %v70
    %vm72 = vcmp.eq.f32.partialorder %v56, inf
    %v73 = vsel %vm72, %v56, %v71
    %vm74 = vcmp.eq.f32.partialorder %v56, 0.0
    %v75 = vand.u32 %v56, 2147483648
    %v76 = vsel %vm74, %v75, %v73
    %v77 = vrsqrt.pop %v59
    %v78 = vmul.f32 %v59, %v77
    %vm79 = vcmp.eq.f32.partialorder %v59, inf
    %v80 = vsel %vm79, %v59, %v78
    %vm81 = vcmp.eq.f32.partialorder %v59, 0.0
    %v82 = vand.u32 %v59, 2147483648
    %v83 = vsel %vm81, %v82, %v80
    %v84 = vrsqrt.pop %v62
    %v85 = vmul.f32 %v62, %v84
    %vm86 = vcmp.eq.f32.partialorder %v62, inf
    %v87 = vsel %vm86, %v62, %v85
    %vm88 = vcmp.eq.f32.partialorder %v62, 0.0
    %v89 = vand.u32 %v62, 2147483648
    %v90 = vsel %vm88, %v89, %v87
    %v91 = vmul.f32 %v44, %v44
    %v92 = vmul.f32 %v45, %v45
    %v93 = vsel %vm50, %v91, 0.0
    %94 = vadd.xlane.f32.xlu0 %v93
    %v95 = vpop.xlane.xlu0 %94
    %v96 = vsel %vm50, %v92, 0.0
    %97 = vadd.xlane.f32.xlu0 %v96
    %v98 = vpop.xlane.xlu0 %97
    %v99 = vrsqrt.pop %v95
    %v100 = vmul.f32 %v95, %v99
    %vm101 = vcmp.eq.f32.partialorder %v95, inf
    %v102 = vsel %vm101, %v95, %v100
    %vm103 = vcmp.eq.f32.partialorder %v95, 0.0
    %v104 = vand.u32 %v95, 2147483648
    %v105 = vsel %vm103, %v104, %v102
    %v106 = vrsqrt.pop %v98
    %v107 = vmul.f32 %v98, %v106
    %vm108 = vcmp.eq.f32.partialorder %v98, inf
    %v109 = vsel %vm108, %v98, %v107
    %vm110 = vcmp.eq.f32.partialorder %v98, 0.0
    %v111 = vand.u32 %v98, 2147483648
    %v112 = vsel %vm110, %v111, %v109
    %v114 = vsel %vm50, %v44, 0
    %v117 = vsel %vm50, %v40, 0
    %v120 = vsel %vm50, %v41, 0
    %122 = vmatprep.subr.mxu0 0.0
    %123 = vmatpush1.xpose.msra.mxu0 %v117
    %124 = vmatprep.subr.mxu0 0.0
    %125 = vmatpush1.xpose.msra.mxu0 %v120
    %126 = vmatprep.subr.mxu0 0.0
    %127 = vmatpush1.xpose.msra.mxu0 0.0
    %128 = vmatprep.subr.mxu0 0.0
    %129 = vmatpush1.xpose.msra.mxu0 0.0
    %130 = vmatprep.subr.mxu0 0.0
    %131 = vmatpush1.xpose.msra.mxu0 0.0
    %132 = vmatprep.subr.mxu0 0.0
    %133 = vmatpush1.xpose.msra.mxu0 0.0
    %134 = vmatprep.subr.mxu0 0.0
    %135 = vmatpush1.xpose.msra.mxu0 0.0
    %136 = vmatprep.subr.mxu0 0.0
    %137 = vmatpush1.xpose.msra.mxu0 0.0
    %138 = vmatprep.subr.mxu0 0.0
    %139 = vmatpush1.xpose.msra.mxu0 0.0
    %140 = vmatprep.subr.mxu0 0.0
    %141 = vmatpush1.xpose.msra.mxu0 0.0
    %142 = vmatprep.subr.mxu0 0.0
    %143 = vmatpush1.xpose.msra.mxu0 0.0
    %144 = vmatprep.subr.mxu0 0.0
    %145 = vmatpush1.xpose.msra.mxu0 0.0
    %146 = vmatprep.subr.mxu0 0.0
    %147 = vmatpush1.xpose.msra.mxu0 0.0
    %148 = vmatprep.subr.mxu0 0.0
    %149 = vmatpush1.xpose.msra.mxu0 0.0
    %150 = vmatprep.subr.mxu0 0.0
    %151 = vmatpush1.xpose.msra.mxu0 0.0
    %152 = vmatprep.subr.mxu0 0.0
    %153 = vmatpush1.xpose.msra.mxu0 0.0
    %154 = vmatprep.subr.mxu0 0.0
    %155 = vmatpush1.xpose.msra.mxu0 0.0
    %156 = vmatprep.subr.mxu0 0.0
    %157 = vmatpush1.xpose.msra.mxu0 0.0
    %158 = vmatprep.subr.mxu0 0.0
    %159 = vmatpush1.xpose.msra.mxu0 0.0
    %160 = vmatprep.subr.mxu0 0.0
    %161 = vmatpush1.xpose.msra.mxu0 0.0
    %162 = vmatprep.subr.mxu0 0.0
    %163 = vmatpush1.xpose.msra.mxu0 0.0
    %164 = vmatprep.subr.mxu0 0.0
    %165 = vmatpush1.xpose.msra.mxu0 0.0
    %166 = vmatprep.subr.mxu0 0.0
    %167 = vmatpush1.xpose.msra.mxu0 0.0
    %168 = vmatprep.subr.mxu0 0.0
    %169 = vmatpush1.xpose.msra.mxu0 0.0
    %170 = vmatprep.subr.mxu0 0.0
    %171 = vmatpush1.xpose.msra.mxu0 0.0
    %172 = vmatprep.subr.mxu0 0.0
    %173 = vmatpush1.xpose.msra.mxu0 0.0
    %174 = vmatprep.subr.mxu0 0.0
    %175 = vmatpush1.xpose.msra.mxu0 0.0
    %176 = vmatprep.subr.mxu0 0.0
    %177 = vmatpush1.xpose.msra.mxu0 0.0
    %178 = vmatprep.subr.mxu0 0.0
    %179 = vmatpush1.xpose.msra.mxu0 0.0
    %180 = vmatprep.subr.mxu0 0.0
    %181 = vmatpush1.xpose.msra.mxu0 0.0
    %182 = vmatprep.subr.mxu0 0.0
    %183 = vmatpush1.xpose.msra.mxu0 0.0
    %184 = vmatprep.subr.mxu0 0.0
    %185 = vmatpush1.xpose.msra.mxu0 0.0
    %186 = vmatprep.mubr.f32.mxu0 0.0
    %187 = vmatmul.mubr.f32.gmra.mrb[0].mxu0 %v114
    %v188 = vpop.f32.mrb[0].mxu0
    %v189 = vadd.f32 0.0, %v188
    %v190 = vpop.f32.mrb[0].mxu0
    %191 = vdwg.mxu0
    %v193 = vsel %vm50, %v45, 0
    %v196 = vsel %vm50, %v42, 0
    %v199 = vsel %vm50, %v43, 0
    %201 = vmatprep.subr.mxu0 0.0
    %202 = vmatpush1.xpose.msra.mxu0 %v196
    %203 = vmatprep.subr.mxu0 0.0
    %204 = vmatpush1.xpose.msra.mxu0 %v199
    %205 = vmatprep.subr.mxu0 0.0
    %206 = vmatpush1.xpose.msra.mxu0 0.0
    %207 = vmatprep.subr.mxu0 0.0
    %208 = vmatpush1.xpose.msra.mxu0 0.0
    %209 = vmatprep.subr.mxu0 0.0
    %210 = vmatpush1.xpose.msra.mxu0 0.0
    %211 = vmatprep.subr.mxu0 0.0
    %212 = vmatpush1.xpose.msra.mxu0 0.0
    %213 = vmatprep.subr.mxu0 0.0
    %214 = vmatpush1.xpose.msra.mxu0 0.0
    %215 = vmatprep.subr.mxu0 0.0
    %216 = vmatpush1.xpose.msra.mxu0 0.0
    %217 = vmatprep.subr.mxu0 0.0
    %218 = vmatpush1.xpose.msra.mxu0 0.0
    %219 = vmatprep.subr.mxu0 0.0
    %220 = vmatpush1.xpose.msra.mxu0 0.0
    %221 = vmatprep.subr.mxu0 0.0
    %222 = vmatpush1.xpose.msra.mxu0 0.0
    %223 = vmatprep.subr.mxu0 0.0
    %224 = vmatpush1.xpose.msra.mxu0 0.0
    %225 = vmatprep.subr.mxu0 0.0
    %226 = vmatpush1.xpose.msra.mxu0 0.0
    %227 = vmatprep.subr.mxu0 0.0
    %228 = vmatpush1.xpose.msra.mxu0 0.0
    %229 = vmatprep.subr.mxu0 0.0
    %230 = vmatpush1.xpose.msra.mxu0 0.0
    %231 = vmatprep.subr.mxu0 0.0
    %232 = vmatpush1.xpose.msra.mxu0 0.0
    %233 = vmatprep.subr.mxu0 0.0
    %234 = vmatpush1.xpose.msra.mxu0 0.0
    %235 = vmatprep.subr.mxu0 0.0
    %236 = vmatpush1.xpose.msra.mxu0 0.0
    %237 = vmatprep.subr.mxu0 0.0
    %238 = vmatpush1.xpose.msra.mxu0 0.0
    %239 = vmatprep.subr.mxu0 0.0
    %240 = vmatpush1.xpose.msra.mxu0 0.0
    %241 = vmatprep.subr.mxu0 0.0
    %242 = vmatpush1.xpose.msra.mxu0 0.0
    %243 = vmatprep.subr.mxu0 0.0
    %244 = vmatpush1.xpose.msra.mxu0 0.0
    %245 = vmatprep.subr.mxu0 0.0
    %246 = vmatpush1.xpose.msra.mxu0 0.0
    %247 = vmatprep.subr.mxu0 0.0
    %248 = vmatpush1.xpose.msra.mxu0 0.0
    %249 = vmatprep.subr.mxu0 0.0
    %250 = vmatpush1.xpose.msra.mxu0 0.0
    %251 = vmatprep.subr.mxu0 0.0
    %252 = vmatpush1.xpose.msra.mxu0 0.0
    %253 = vmatprep.subr.mxu0 0.0
    %254 = vmatpush1.xpose.msra.mxu0 0.0
    %255 = vmatprep.subr.mxu0 0.0
    %256 = vmatpush1.xpose.msra.mxu0 0.0
    %257 = vmatprep.subr.mxu0 0.0
    %258 = vmatpush1.xpose.msra.mxu0 0.0
    %259 = vmatprep.subr.mxu0 0.0
    %260 = vmatpush1.xpose.msra.mxu0 0.0
    %261 = vmatprep.subr.mxu0 0.0
    %262 = vmatpush1.xpose.msra.mxu0 0.0
    %263 = vmatprep.subr.mxu0 0.0
    %264 = vmatpush1.xpose.msra.mxu0 0.0
    %265 = vmatprep.mubr.f32.mxu0 0.0
    %266 = vmatmul.mubr.f32.gmra.mrb[0].mxu0 %v193
    %v267 = vpop.f32.mrb[0].mxu0
    %v268 = vadd.f32 0.0, %v267
    %v269 = vpop.f32.mrb[0].mxu0
    %270 = vdwg.mxu0
    %v275 = vlaneseq
    %v276 = vand.u32 %v275, 127
    %v277 = vlaneseq
    %v278 = vshrl.u32 %v277, 7
    %v279 = vsub.s32 %v276, %v278
    %v280 = vrot.slane %v69, %v279
    %v281 = vadd.s32 %v276, 4294967288
    %v282 = vlaneseq
    %v283 = vshrl.u32 %v282, 7
    %v284 = vsub.s32 %v281, %v283
    %v285 = vrot.slane %v76, %v284
    %vm286 = vcmask 130112
    %v287 = vsel %vm286, %v285, %v280
    %v288 = vlaneseq
    %v289 = vshrl.u32 %v288, 7
    %v290 = vsub.s32 %v276, %v289
    %v291 = vrot.slane %v83, %v290
    %v292 = vlaneseq
    %v293 = vshrl.u32 %v292, 7
    %v294 = vsub.s32 %v281, %v293
    %v295 = vrot.slane %v90, %v294
    %v296 = vsel %vm286, %v295, %v291
    %vm297 = vcmask 1042434
    %v298 = vsel %vm297, %v287, %v287
    %vm299 = vcmask 1043459
    %v300 = vsel %vm299, %v287, %v298
    %vm301 = vcmask 1044484
    %v302 = vsel %vm301, %v287, %v300
    %vm303 = vcmask 1045509
    %v304 = vsel %vm303, %v287, %v302
    %vm305 = vcmask 1046534
    %v306 = vsel %vm305, %v287, %v304
    %vm307 = vcmask 1047559
    %v308 = vsel %vm307, %v287, %v306
    %v309 = vsel %vm297, %v296, %v296
    %v310 = vsel %vm299, %v296, %v309
    %v311 = vsel %vm301, %v296, %v310
    %v312 = vsel %vm303, %v296, %v311
    %v313 = vsel %vm305, %v296, %v312
    %v314 = vsel %vm307, %v296, %v313
    %v317 = vmul.f32 %v105, %v308
    %v318 = vmul.f32 %v112, %v314
    %v319 = vmax.f32 %v317, 1e-08
    %v320 = vmax.f32 %v318, 1e-08
    %v321 = vrcp.pop %v319
    %v322 = vmul.f32 %v189, %v321
    %v323 = vrcp.pop %v320
    %v324 = vmul.f32 %v268, %v323
    %vm325 = vcmask 130048
    %v326 = vsel %vm325, %v322, -inf
    %327 = vmax.xlane.f32.xlu0 %v326
    %v328 = vpop.xlane.xlu0 %327
    %v329 = vsel %vm325, %v324, -inf
    %330 = vmax.xlane.f32.xlu0 %v329
    %v331 = vpop.xlane.xlu0 %330
    %v332 = vsub.f32 %v322, %v328
    %v333 = vsub.f32 %v324, %v331
    %v334 = vmul.f32 %v332, 1.442695
    %v335 = vpow.pop %v334
    %v336 = vmul.f32 %v333, 1.442695
    %v337 = vpow.pop %v336
    %v338 = vsel %vm325, %v335, 0.0
    %339 = vadd.xlane.f32.xlu0 %v338
    %v340 = vpop.xlane.xlu0 %339
    %v341 = vsel %vm325, %v337, 0.0
    %342 = vadd.xlane.f32.xlu0 %v341
    %v343 = vpop.xlane.xlu0 %342
    %v344 = vrcp.pop %v340
    %v345 = vmul.f32 %v335, %v344
    %v346 = vrcp.pop %v343
    %v347 = vmul.f32 %v337, %v346
    %v349 = vsel %vm325, %v345, 0
    %351 = vmatprep.subr.mxu0 0.0
    %352 = vmatpush1.msra.mxu0 %v40
    %353 = vmatprep.subr.mxu0 0.0
    %354 = vmatpush1.msra.mxu0 %v41
    %355 = vmatprep.subr.mxu0 0.0
    %356 = vmatpush1.msra.mxu0 0.0
    %357 = vmatprep.subr.mxu0 0.0
    %358 = vmatpush1.msra.mxu0 0.0
    %359 = vmatprep.subr.mxu0 0.0
    %360 = vmatpush1.msra.mxu0 0.0
    %361 = vmatprep.subr.mxu0 0.0
    %362 = vmatpush1.msra.mxu0 0.0
    %363 = vmatprep.subr.mxu0 0.0
    %364 = vmatpush1.msra.mxu0 0.0
    %365 = vmatprep.subr.mxu0 0.0
    %366 = vmatpush1.msra.mxu0 0.0
    %367 = vmatprep.subr.mxu0 0.0
    %368 = vmatpush1.msra.mxu0 0.0
    %369 = vmatprep.subr.mxu0 0.0
    %370 = vmatpush1.msra.mxu0 0.0
    %371 = vmatprep.subr.mxu0 0.0
    %372 = vmatpush1.msra.mxu0 0.0
    %373 = vmatprep.subr.mxu0 0.0
    %374 = vmatpush1.msra.mxu0 0.0
    %375 = vmatprep.subr.mxu0 0.0
    %376 = vmatpush1.msra.mxu0 0.0
    %377 = vmatprep.subr.mxu0 0.0
    %378 = vmatpush1.msra.mxu0 0.0
    %379 = vmatprep.subr.mxu0 0.0
    %380 = vmatpush1.msra.mxu0 0.0
    %381 = vmatprep.subr.mxu0 0.0
    %382 = vmatpush1.msra.mxu0 0.0
    %383 = vmatprep.subr.mxu0 0.0
    %384 = vmatpush1.msra.mxu0 0.0
    %385 = vmatprep.subr.mxu0 0.0
    %386 = vmatpush1.msra.mxu0 0.0
    %387 = vmatprep.subr.mxu0 0.0
    %388 = vmatpush1.msra.mxu0 0.0
    %389 = vmatprep.subr.mxu0 0.0
    %390 = vmatpush1.msra.mxu0 0.0
    %391 = vmatprep.subr.mxu0 0.0
    %392 = vmatpush1.msra.mxu0 0.0
    %393 = vmatprep.subr.mxu0 0.0
    %394 = vmatpush1.msra.mxu0 0.0
    %395 = vmatprep.subr.mxu0 0.0
    %396 = vmatpush1.msra.mxu0 0.0
    %397 = vmatprep.subr.mxu0 0.0
    %398 = vmatpush1.msra.mxu0 0.0
    %399 = vmatprep.subr.mxu0 0.0
    %400 = vmatpush1.msra.mxu0 0.0
    %401 = vmatprep.subr.mxu0 0.0
    %402 = vmatpush1.msra.mxu0 0.0
    %403 = vmatprep.subr.mxu0 0.0
    %404 = vmatpush1.msra.mxu0 0.0
    %405 = vmatprep.subr.mxu0 0.0
    %406 = vmatpush1.msra.mxu0 0.0
    %407 = vmatprep.subr.mxu0 0.0
    %408 = vmatpush1.msra.mxu0 0.0
    %409 = vmatprep.subr.mxu0 0.0
    %410 = vmatpush1.msra.mxu0 0.0
    %411 = vmatprep.subr.mxu0 0.0
    %412 = vmatpush1.msra.mxu0 0.0
    %413 = vmatprep.subr.mxu0 0.0
    %414 = vmatpush1.msra.mxu0 0.0
    %415 = vmatprep.mubr.f32.mxu0 0.0
    %416 = vmatmul.mubr.f32.gmra.mrb[0].mxu0 %v349
    %v417 = vpop.f32.mrb[0].mxu0
    %v418 = vadd.f32 0.0, %v417
    %v419 = vpop.f32.mrb[0].mxu0
    %420 = vdwg.mxu0
    %v422 = vsel %vm325, %v347, 0
    %424 = vmatprep.subr.mxu0 0.0
    %425 = vmatpush1.msra.mxu0 %v42
    %426 = vmatprep.subr.mxu0 0.0
    %427 = vmatpush1.msra.mxu0 %v43
    %428 = vmatprep.subr.mxu0 0.0
    %429 = vmatpush1.msra.mxu0 0.0
    %430 = vmatprep.subr.mxu0 0.0
    %431 = vmatpush1.msra.mxu0 0.0
    %432 = vmatprep.subr.mxu0 0.0
    %433 = vmatpush1.msra.mxu0 0.0
    %434 = vmatprep.subr.mxu0 0.0
    %435 = vmatpush1.msra.mxu0 0.0
    %436 = vmatprep.subr.mxu0 0.0
    %437 = vmatpush1.msra.mxu0 0.0
    %438 = vmatprep.subr.mxu0 0.0
    %439 = vmatpush1.msra.mxu0 0.0
    %440 = vmatprep.subr.mxu0 0.0
    %441 = vmatpush1.msra.mxu0 0.0
    %442 = vmatprep.subr.mxu0 0.0
    %443 = vmatpush1.msra.mxu0 0.0
    %444 = vmatprep.subr.mxu0 0.0
    %445 = vmatpush1.msra.mxu0 0.0
    %446 = vmatprep.subr.mxu0 0.0
    %447 = vmatpush1.msra.mxu0 0.0
    %448 = vmatprep.subr.mxu0 0.0
    %449 = vmatpush1.msra.mxu0 0.0
    %450 = vmatprep.subr.mxu0 0.0
    %451 = vmatpush1.msra.mxu0 0.0
    %452 = vmatprep.subr.mxu0 0.0
    %453 = vmatpush1.msra.mxu0 0.0
    %454 = vmatprep.subr.mxu0 0.0
    %455 = vmatpush1.msra.mxu0 0.0
    %456 = vmatprep.subr.mxu0 0.0
    %457 = vmatpush1.msra.mxu0 0.0
    %458 = vmatprep.subr.mxu0 0.0
    %459 = vmatpush1.msra.mxu0 0.0
    %460 = vmatprep.subr.mxu0 0.0
    %461 = vmatpush1.msra.mxu0 0.0
    %462 = vmatprep.subr.mxu0 0.0
    %463 = vmatpush1.msra.mxu0 0.0
    %464 = vmatprep.subr.mxu0 0.0
    %465 = vmatpush1.msra.mxu0 0.0
    %466 = vmatprep.subr.mxu0 0.0
    %467 = vmatpush1.msra.mxu0 0.0
    %468 = vmatprep.subr.mxu0 0.0
    %469 = vmatpush1.msra.mxu0 0.0
    %470 = vmatprep.subr.mxu0 0.0
    %471 = vmatpush1.msra.mxu0 0.0
    %472 = vmatprep.subr.mxu0 0.0
    %473 = vmatpush1.msra.mxu0 0.0
    %474 = vmatprep.subr.mxu0 0.0
    %475 = vmatpush1.msra.mxu0 0.0
    %476 = vmatprep.subr.mxu0 0.0
    %477 = vmatpush1.msra.mxu0 0.0
    %478 = vmatprep.subr.mxu0 0.0
    %479 = vmatpush1.msra.mxu0 0.0
    %480 = vmatprep.subr.mxu0 0.0
    %481 = vmatpush1.msra.mxu0 0.0
    %482 = vmatprep.subr.mxu0 0.0
    %483 = vmatpush1.msra.mxu0 0.0
    %484 = vmatprep.subr.mxu0 0.0
    %485 = vmatpush1.msra.mxu0 0.0
    %486 = vmatprep.subr.mxu0 0.0
    %487 = vmatpush1.msra.mxu0 0.0
    %488 = vmatprep.mubr.f32.mxu0 0.0
    %489 = vmatmul.mubr.f32.gmra.mrb[0].mxu0 %v422
    %v490 = vpop.f32.mrb[0].mxu0
    %v491 = vadd.f32 0.0, %v490
    %v492 = vpop.f32.mrb[0].mxu0
    %493 = vdwg.mxu0
    %494 = vst.msk [vmem:[#allocation7] sm:$0xff] %vm50, %v418
    %495 = vst.msk [vmem:[#allocation7 + $0x8] sm:$0xff] %vm50, %v491
    // Predicated region
    $region18: #{tpu_custom_call.1} parent=1 // pred_check
      _
    $region19: #{tpu_custom_call.1} parent=1 // pred_check_branch
      %497 = sbr.rel (0) target = $region21
    $region20: #{tpu_custom_call.1} parent=1 // pred_region
      %s499 = ssub.s32 256, 256
      %500 = vsyncadd [#allocation4], %s499
      %s501 = sshll.u32 [#allocation7], 4
      %s502 = int_to_ptr.vmem [resolvable:$true] %s501
      %507 = dma.vmem_to_hbm [thread:$0]  %s502, 256, %s2, [#allocation4], 128, 128, 8
    $region21: #{tpu_custom_call.1} parent=1 // pred_fallthru
      _
    // Predicated region
    $region22: #{tpu_custom_call.1} parent=1 // pred_check
      _
    $region23: #{tpu_custom_call.1} parent=1 // pred_check_branch
      %509 = sbr.rel (0) target = $region25
    $region24: #{tpu_custom_call.1} parent=1 // pred_region
      %510 = dma.done [#allocation4], 256
    $region25: #{tpu_custom_call.1} parent=1 // pred_fallthru
      _
    %511 = vsyncpa [#allocation3], 1
    %512 = vsyncpa [#allocation6], 1
    %513 = vsyncpa [#allocation4], 1

</llo_original>
